<compile_context>
chip_gen: v7x
topology: tpu7x:2x2x1
jax: 0.10.0
libtpu: 0.0.40
codegen_flags: <defaults>
</compile_context>

<pallas_src>
import jax
import jax.numpy as jnp
from jax import lax
from jax.experimental import pallas as pl
from jax.experimental.pallas import tpu as pltpu

EPS = 1e-5


def _instance_norm_kernel(x_ref, o_ref):
    # x_ref block: (TILE_NC, H*W) -- one (n, c) instance per row, lane-dense.
    x = x_ref[...].astype(jnp.float32)
    inv_n = jnp.float32(1.0 / x.shape[-1])
    # Fused single-pass reduction: sum and sum-of-squares.
    s = jnp.sum(x, axis=-1, keepdims=True)
    s2 = jnp.sum(x * x, axis=-1, keepdims=True)
    mean = s * inv_n
    # Biased variance (divide by H*W); clamp tiny negatives from cancellation.
    var = jnp.maximum(s2 * inv_n - mean * mean, 0.0)
    inv = lax.rsqrt(var + EPS)
    o_ref[...] = ((x - mean) * inv).astype(o_ref.dtype)


def _choose_tile_nc(rows: int, hw: int, itemsize: int) -> int:
    """Rows per block: multiple of 8, VMEM-friendly, >=2 grid steps when possible."""
    # Per-block VMEM footprint ~= 4 * tile_nc * hw * itemsize
    # (input + output, each double-buffered). Stay well under the smallest
    # scoped-VMEM default (16 MiB on v5e) so the sizing works on v5e/v6e/v7x.
    budget = 8 * 1024 * 1024
    per_row = 4 * hw * itemsize
    tile_nc = max(1, budget // per_row)
    tile_nc = min(tile_nc, 256)                      # amortization saturates
    tile_nc = max(8, (tile_nc // 8) * 8)             # sublane-aligned

    rows8 = pl.cdiv(rows, 8) * 8
    tile_nc = min(tile_nc, rows8)                    # don't over-pad tiny inputs
    # Keep >= 2 grid steps along the parallel axis when there is enough work,
    # so v7x's second TensorCore isn't idle.
    if rows8 >= 16:
        tile_nc = min(tile_nc, max(8, (rows8 // 2) // 8 * 8))
    return tile_nc


def instance_norm2d(x: jax.Array) -> jax.Array:
    """InstanceNorm2d with affine=False, track_running_stats=False, eps=1e-5.

    x: (N, C, H, W)
    """
    N, C, H, W = x.shape
    rows, hw = N * C, H * W
    itemsize = jnp.dtype(x.dtype).itemsize

    x2 = x.reshape(rows, hw)

    tile_nc = _choose_tile_nc(rows, hw, itemsize)
    if tile_nc >= rows:
        # One block covers everything: block_shape == full array dims is legal
        # regardless of the (8, 128) rule, so skip the pad/slice round-trip.
        tile_nc = rows
        padded_rows = rows
    else:
        padded_rows = pl.cdiv(rows, tile_nc) * tile_nc
        if padded_rows != rows:
            # Zero rows normalize to zero ((0-0)*rsqrt(0+eps) == 0), sliced off below.
            x2 = jnp.pad(x2, ((0, padded_rows - rows), (0, 0)))

    # TODO(synk): add a spatially-tiled (grid over H*W, accumulator) path for
    # very large planes where a full (tile_nc, H*W) block would not fit VMEM.
    block_bytes = tile_nc * hw * itemsize
    vmem_need = 4 * block_bytes + (1 << 20)
    vmem_limit = min(max(vmem_need, 16 * 1024 * 1024), 64 * 1024 * 1024)

    out = pl.pallas_call(
        _instance_norm_kernel,
        out_shape=jax.ShapeDtypeStruct((padded_rows, hw), x.dtype),
        grid_spec=pltpu.PrefetchScalarGridSpec(
            num_scalar_prefetch=0,
            grid=(padded_rows // tile_nc,),
            in_specs=[pl.BlockSpec((tile_nc, hw), lambda i: (i, 0))],
            out_specs=pl.BlockSpec((tile_nc, hw), lambda i: (i, 0)),
        ),
        compiler_params=pltpu.CompilerParams(
            dimension_semantics=("parallel",),
            vmem_limit_bytes=int(vmem_limit),
        ),
    )(x2)

    if padded_rows != rows:
        out = out[:rows]
    return out.reshape(N, C, H, W)


def _reference(x: jax.Array) -> jax.Array:
    xf = x.astype(jnp.float32)
    mean = jnp.mean(xf, axis=(2, 3), keepdims=True)
    var = jnp.mean((xf - mean) ** 2, axis=(2, 3), keepdims=True)
    return ((xf - mean) * lax.rsqrt(var + EPS)).astype(x.dtype)


if __name__ == "__main__":
    key = jax.random.PRNGKey(0)
    # NCHW, C=3 to match nn.InstanceNorm2d(3)
    x = jax.random.normal(key, (2, 3, 16, 16), dtype=jnp.float32)

    out = instance_norm2d(x)
    out = jax.block_until_ready(out)

    ref = _reference(x)
    assert out.shape == x.shape
    assert jnp.max(jnp.abs(out - ref)) < 1e-4

    print("KERNEL_OK")
</pallas_src>

<mosaic_0001>
module attributes {stable_mosaic.version = 11 : i64} {
  func.func @_instance_norm_kernel(%arg0: i32, %arg1: memref<6x256xf32, #tpu.memory_space<vmem>>, %arg2: memref<6x256xf32, #tpu.memory_space<vmem>>) attributes {dimension_semantics = [#tpu.dimension_semantics<parallel>], iteration_bounds = array<i64: 1>, scalar_prefetch = 0 : i64, scratch_operands = 0 : i64, tpu.core_type = #tpu.core_type<tc>, window_params = [{transform_indices = @transform_0, window_bounds = array<i64: 6, 256>}, {transform_indices = @transform_1, window_bounds = array<i64: 6, 256>}]} {
    %c0 = arith.constant 0 : index
    %c0_0 = arith.constant 0 : index
    %0 = vector.load %arg1[%c0, %c0_0] : memref<6x256xf32, #tpu.memory_space<vmem>>, vector<6x256xf32>
    %cst = arith.constant dense<0.000000e+00> : vector<6xf32>
    %1 = vector.multi_reduction <add>, %0, %cst [1] : vector<6x256xf32> to vector<6xf32>
    %2 = vector.shape_cast %1 : vector<6xf32> to vector<6x1xf32>
    %3 = arith.mulf %0, %0 : vector<6x256xf32>
    %cst_1 = arith.constant dense<0.000000e+00> : vector<6xf32>
    %4 = vector.multi_reduction <add>, %3, %cst_1 [1] : vector<6x256xf32> to vector<6xf32>
    %5 = vector.shape_cast %4 : vector<6xf32> to vector<6x1xf32>
    %cst_2 = arith.constant 3.906250e-03 : f32
    %6 = vector.broadcast %cst_2 : f32 to vector<6x1xf32>
    %7 = arith.mulf %2, %6 : vector<6x1xf32>
    %cst_3 = arith.constant 3.906250e-03 : f32
    %8 = vector.broadcast %cst_3 : f32 to vector<6x1xf32>
    %9 = arith.mulf %5, %8 : vector<6x1xf32>
    %10 = arith.mulf %7, %7 : vector<6x1xf32>
    %11 = arith.subf %9, %10 : vector<6x1xf32>
    %cst_4 = arith.constant 0.000000e+00 : f32
    %12 = vector.broadcast %cst_4 : f32 to vector<6x1xf32>
    %13 = arith.maximumf %11, %12 : vector<6x1xf32>
    %cst_5 = arith.constant 9.99999974E-6 : f32
    %14 = vector.broadcast %cst_5 : f32 to vector<6x1xf32>
    %15 = arith.addf %13, %14 : vector<6x1xf32>
    %16 = math.rsqrt %15 : vector<6x1xf32>
    %17 = vector.broadcast %7 : vector<6x1xf32> to vector<6x256xf32>
    %18 = arith.subf %0, %17 : vector<6x256xf32>
    %19 = vector.broadcast %16 : vector<6x1xf32> to vector<6x256xf32>
    %20 = arith.mulf %18, %19 : vector<6x256xf32>
    %c0_6 = arith.constant 0 : index
    %c0_7 = arith.constant 0 : index
    %21 = vector.load %arg2[%c0_6, %c0_7] : memref<6x256xf32, #tpu.memory_space<vmem>>, vector<6x256xf32>
    tpu.vector_store %arg2[%c0_6, %c0_7], %20 {strides = array<i32>} : memref<6x256xf32, #tpu.memory_space<vmem>>, vector<6x256xf32>,
    return
  }
  func.func @transform_0(%arg0: i32) -> (i32, i32) {
    %c0_i32 = arith.constant 0 : i32
    %c0_i32_0 = arith.constant 0 : i32
    return %arg0, %c0_i32 : i32, i32
  }
  func.func @transform_1(%arg0: i32) -> (i32, i32) {
    %c0_i32 = arith.constant 0 : i32
    %c0_i32_0 = arith.constant 0 : i32
    return %arg0, %c0_i32 : i32, i32
  }
}

</mosaic_0001>

<llo_original>
// kernel: tpu_custom_call.1
$region0: #{tpu_custom_call.1}
  #allocation0 [shape = 'u32[]', space=smem, size = 0x4, offset = 0x4, fixed_abs, tag = 'smem constant byte address 0x4 - core index']
  #allocation1 [shape = 'u32[144,128]{1,0:T(1,128)}', space=vmem, size = 0x12000, scoped, tag = 'internal scratch']
  %s0 = inlined_call_operand.hbm [shape: f32[6,256], index: 0, kind: input, shape index: {}]
  %s1 = inlined_call_operand.hbm [shape: f32[6,256], index: 1, kind: output, shape index: {}]
  %s2 = sld [smem:[#allocation0]]
  $region18: #{tpu_custom_call.1} parent=0
    _
  %s4 = ssub.s32 1, %s2
  %s5 = scalar_select 0, %s4, %s2
  $region1: #{tpu_custom_call.1} parent=0
    #allocation2 [shape = 'u8[8192]{0}', space=vmem, size = 0x2000, scoped, tag = 'input window, operand 0, single buffered']
    #allocation3 [shape = 's32[1]{0}', space=sflag, size = 0x4, scoped, tag = 'scoped memory for tpu_custom_call.1']
    #allocation4 [shape = 's32[1]{0}', space=sflag, size = 0x4, scoped, tag = 'scoped memory for tpu_custom_call.1']
    #allocation5 [shape = 'u8[8192]{0}', space=vmem, size = 0x2000, scoped, tag = 'output window, operand 0, single buffered']
    %6 = vsyncpa [#allocation3], 0
    %7 = vsyncpa [#allocation4], 0
    // Predicated region
    $region2: #{tpu_custom_call.1} parent=1 // pred_check
      _
    $region3: #{tpu_custom_call.1} parent=1 // pred_check_branch
      %9 = sbr.rel (0) target = $region5
    $region4: #{tpu_custom_call.1} parent=1 // pred_region
      %s11 = ssub.s32 256, 256
      %12 = vsyncadd [#allocation3], %s11
      %s14 = sshll.u32 [#allocation2], 4
      %s15 = int_to_ptr.vmem [resolvable:$true] %s14
      %17 = dma.hbm_to_vmem [thread:$0]  %s0, 256, %s15, [#allocation3]
    $region5: #{tpu_custom_call.1} parent=1 // pred_fallthru
      _
    // Predicated region
    $region6: #{tpu_custom_call.1} parent=1 // pred_check
      _
    $region7: #{tpu_custom_call.1} parent=1 // pred_check_branch
      %19 = sbr.rel (0) target = $region9
    $region8: #{tpu_custom_call.1} parent=1 // pred_region
      %20 = dma.done [#allocation3], 256
    $region9: #{tpu_custom_call.1} parent=1 // pred_fallthru
      _
    %v21 = vld [vmem:[#allocation2] sm:$0x3f]
    %v22 = vld [vmem:[#allocation2 + $0x8] sm:$0x3f]
    %vm23 = vcmask 1045504
    %v24 = vsel %vm23, %v21, 0.0
    %v25 = vsel %vm23, %v22, 0.0
    %v26 = vadd.f32 %v24, %v25
    %27 = vadd.xlane.f32.xlu0 %v26
    %v28 = vpop.xlane.xlu0 %27
    %v29 = vmul.f32 %v21, %v21
    %v30 = vmul.f32 %v22, %v22
    %v31 = vsel %vm23, %v29, 0.0
    %v32 = vsel %vm23, %v30, 0.0
    %v33 = vadd.f32 %v31, %v32
    %34 = vadd.xlane.f32.xlu0 %v33
    %v35 = vpop.xlane.xlu0 %34
    %v36 = vmul.f32 %v28, 0.00390625
    %v37 = vmul.f32 %v35, 0.00390625
    %v38 = vmul.f32 %v36, %v36
    %v39 = vsub.f32 %v37, %v38
    %v40 = vmax.f32 %v39, 0.0
    %v41 = vadd.f32 %v40, 1e-05
    %v42 = vrsqrt.pop %v41
    %v43 = vsub.f32 %v21, %v36
    %v44 = vsub.f32 %v22, %v36
    %v45 = vmul.f32 %v43, %v42
    %v46 = vmul.f32 %v44, %v42
    %47 = vst [vmem:[#allocation5] sm:$0x3f] %v45
    %48 = vst [vmem:[#allocation5 + $0x8] sm:$0x3f] %v46
    // Predicated region
    $region10: #{tpu_custom_call.1} parent=1 // pred_check
      _
    $region11: #{tpu_custom_call.1} parent=1 // pred_check_branch
      %50 = sbr.rel (0) target = $region13
    $region12: #{tpu_custom_call.1} parent=1 // pred_region
      %s52 = ssub.s32 256, 256
      %53 = vsyncadd [#allocation4], %s52
      %s55 = sshll.u32 [#allocation5], 4
      %s56 = int_to_ptr.vmem [resolvable:$true] %s55
      %58 = dma.vmem_to_hbm [thread:$0]  %s56, 256, %s1, [#allocation4]
    $region13: #{tpu_custom_call.1} parent=1 // pred_fallthru
      _
    // Predicated region
    $region14: #{tpu_custom_call.1} parent=1 // pred_check
      _
    $region15: #{tpu_custom_call.1} parent=1 // pred_check_branch
      %60 = sbr.rel (0) target = $region17
    $region16: #{tpu_custom_call.1} parent=1 // pred_region
      %61 = dma.done [#allocation4], 256
    $region17: #{tpu_custom_call.1} parent=1 // pred_fallthru
      _
    %62 = vsyncpa [#allocation3], 1
    %63 = vsyncpa [#allocation4], 1

</llo_original>
